<compile_context>
chip_gen: v6e
topology: v6e:2x2x1
jax: 0.10.0
libtpu: 0.0.40
codegen_flags: <defaults>
</compile_context>

<pallas_src>
import functools

import jax
import jax.numpy as jnp
from jax.experimental import pallas as pl
from jax.experimental.pallas import tpu as pltpu


def _round_up(n, m):
    return (n + m - 1) // m * m


def prepare_params(w, b):
    """One-time weight/bias re-layout (call at parameter init, NOT per forward).

    w: (Cout, Cin, K) torch Conv1d weight layout.
    Returns:
      w_flat: (Cout, K * Cin_pad), Cin padded to a multiple of 8 so each
              shifted im2col slab sits on an 8-sublane boundary; the padding
              columns are zero so they contribute nothing to the contraction.
      b_col : (Cout, 1)
    """
    Cout, Cin, K = w.shape
    Cin_pad = _round_up(Cin, 8)
    w_k = jnp.transpose(w, (0, 2, 1))                          # (Cout, K, Cin)
    w_k = jnp.pad(w_k, ((0, 0), (0, 0), (0, Cin_pad - Cin)))   # (Cout, K, Cin_pad)
    return w_k.reshape(Cout, K * Cin_pad), b.reshape(Cout, 1)


def _conv_cat_relu_kernel(x_ref, w_ref, b_ref, o_ref, xcol_ref, *, ksize, cin_pad):
    """Fused Conv1d + bias + ReLU + cat([y, y], channel) for one batch block.

    x_ref   : (B_blk, Cin, L)
    w_ref   : (Cout, K*Cin_pad)    pre-flattened weight (zero pad columns)
    b_ref   : (Cout, 1)
    o_ref   : (B_blk, 2, Cout, L_out)
    xcol_ref: (K*Cin_pad, L_out)   VMEM scratch (fused im2col staging)
    """
    b_blk, cin, _ = x_ref.shape
    l_out = o_ref.shape[-1]

    # Zero once so the Cin -> Cin_pad padding rows are 0 (uninitialized VMEM
    # could hold NaN/Inf, which would poison 0 * garbage in the matmul).
    xcol_ref[...] = jnp.zeros_like(xcol_ref)

    for bi in range(b_blk):                       # static unroll (B_blk <= 2)
        # Fused im2col: K shifted (Cin, L_out) slabs stacked on the sublane
        # axis, each starting on an 8-sublane boundary (cin_pad multiple of 8).
        for k in range(ksize):                    # static unroll (K = 5)
            xcol_ref[pl.ds(k * cin_pad, cin), :] = x_ref[bi, :, pl.ds(k, l_out)]

        # Single MXU contraction over K*Cin (replaces 5 dots + 4 adds).
        y = jnp.dot(w_ref[...], xcol_ref[...],
                    preferred_element_type=jnp.float32)        # (Cout, L_out)

        # Fused bias + ReLU epilogue; store into BOTH concat halves while the
        # tile is still in vregs -> cat + view(B, -1) are free in memory order.
        y = jnp.maximum(y + b_ref[...], 0.0).astype(o_ref.dtype)
        o_ref[bi, 0, :, :] = y
        o_ref[bi, 1, :, :] = y


def _has_multiple_tensorcores():
    # v7x exposes 2 TensorCores per chip; v5e/v6e have 1 (there a per-batch
    # grid step is pure overhead).  Fall back to the collapsed path on error.
    try:
        kind = jax.devices()[0].device_kind.lower()
    except Exception:
        return False
    return "7" in kind


def model_forward(x, w_flat, b_col, *, ksize=5):
    """y = relu(cat([conv1d(x), conv1d(x)], dim=1).view(B, -1))."""
    B, Cin, L = x.shape
    Cout, KCp = w_flat.shape
    Cin_pad = KCp // ksize
    L_out = L - ksize + 1

    if _has_multiple_tensorcores():
        # v7x: keep batch as a parallel grid so the 2 elements split across TCs.
        grid = (B,)
        b_blk = 1
        x_idx = lambda i: (i, 0, 0)
        o_idx = lambda i: (i, 0, 0, 0)
        semantics = ("parallel",)
    else:
        # v5e/v6e: single TC, launch-overhead-bound -> one grid step for the
        # whole batch, B unrolled statically inside the kernel.
        grid = (1,)
        b_blk = B
        x_idx = lambda i: (0, 0, 0)
        o_idx = lambda i: (0, 0, 0, 0)
        semantics = ("arbitrary",)

    kernel = functools.partial(_conv_cat_relu_kernel, ksize=ksize, cin_pad=Cin_pad)

    out = pl.pallas_call(
        kernel,
        out_shape=jax.ShapeDtypeStruct((B, 2, Cout, L_out), x.dtype),
        grid=grid,
        in_specs=[
            pl.BlockSpec((b_blk, Cin, L), x_idx),
            pl.BlockSpec((Cout, KCp), lambda i: (0, 0)),
            pl.BlockSpec((Cout, 1), lambda i: (0, 0)),
        ],
        out_specs=pl.BlockSpec((b_blk, 2, Cout, L_out), o_idx),
        scratch_shapes=[pltpu.VMEM((KCp, L_out), jnp.float32)],
        compiler_params=pltpu.CompilerParams(dimension_semantics=semantics),
    )(x, w_flat, b_col)

    # (B, 2, Cout, L_out) is already cat-along-channel memory order; flatten
    # to (B, 2*Cout*L_out) is a contiguous view matching torch's view(B, -1).
    return out.reshape(B, -1)


if __name__ == "__main__":
    key = jax.random.PRNGKey(0)
    kx, kw, kb = jax.random.split(key, 3)

    B, Cin, L = 2, 42, 100
    Cout, K = 56, 5

    x = jax.random.normal(kx, (B, Cin, L), dtype=jnp.float32)

    # Deterministic Conv1d-style init: U(-sqrt(1/(Cin*K)), +sqrt(1/(Cin*K)))
    bound = 1.0 / jnp.sqrt(jnp.float32(Cin * K))
    w = jax.random.uniform(kw, (Cout, Cin, K), dtype=jnp.float32,
                           minval=-bound, maxval=bound)
    b = jax.random.uniform(kb, (Cout,), dtype=jnp.float32,
                           minval=-bound, maxval=bound)

    # One-time parameter re-layout (outside the per-forward path).
    w_flat, b_col = prepare_params(w, b)
    w_flat, b_col = jax.block_until_ready((w_flat, b_col))

    fwd = jax.jit(model_forward)
    out = fwd(x, w_flat, b_col)
    jax.block_until_ready(out)
    assert out.shape == (B, 2 * Cout * (L - K + 1)), out.shape  # (2, 10752)

    # Pure-JAX reference: conv -> bias -> cat -> view -> relu.
    ref = jax.lax.conv_general_dilated(
        x, w, window_strides=(1,), padding="VALID",
        dimension_numbers=("NCH", "OIH", "NCH"),
        precision=jax.lax.Precision.HIGHEST) + b[None, :, None]
    ref = jnp.maximum(jnp.concatenate([ref, ref], axis=1).reshape(B, -1), 0.0)
    assert jnp.allclose(out, ref, atol=1e-3, rtol=1e-3)

    print("KERNEL_OK")
</pallas_src>

<mosaic_0001>
module attributes {stable_mosaic.version = 11 : i64} {
  func.func @_conv_cat_relu_kernel(%arg0: i32, %arg1: memref<2x42x100xf32, #tpu.memory_space<vmem>>, %arg2: memref<56x240xf32, #tpu.memory_space<vmem>>, %arg3: memref<56x1xf32, #tpu.memory_space<vmem>>, %arg4: memref<2x2x56x96xf32, #tpu.memory_space<vmem>>, %arg5: memref<240x96xf32, #tpu.memory_space<vmem>>) attributes {dimension_semantics = [#tpu.dimension_semantics<arbitrary>], iteration_bounds = array<i64: 1>, scalar_prefetch = 0 : i64, scratch_operands = 1 : i64, tpu.core_type = #tpu.core_type<tc>, window_params = [{pipeline_mode = #tpu.pipeline_mode<synchronous>, transform_indices = @transform_0, window_bounds = array<i64: 2, 42, 100>}, {pipeline_mode = #tpu.pipeline_mode<synchronous>, transform_indices = @transform_1, window_bounds = array<i64: 56, 240>}, {pipeline_mode = #tpu.pipeline_mode<synchronous>, transform_indices = @transform_2, window_bounds = array<i64: 56, 1>}, {pipeline_mode = #tpu.pipeline_mode<synchronous>, transform_indices = @transform_3, window_bounds = array<i64: 2, 2, 56, 96>}]} {
    %cst = arith.constant 0.000000e+00 : f32
    %0 = vector.broadcast %cst : f32 to vector<240x96xf32>
    %c0 = arith.constant 0 : index
    %c0_0 = arith.constant 0 : index
    %1 = vector.load %arg5[%c0, %c0_0] : memref<240x96xf32, #tpu.memory_space<vmem>>, vector<240x96xf32>
    tpu.vector_store %arg5[%c0, %c0_0], %0 {strides = array<i32>} : memref<240x96xf32, #tpu.memory_space<vmem>>, vector<240x96xf32>,
    %c0_1 = arith.constant 0 : index
    %c0_2 = arith.constant 0 : index
    %c0_3 = arith.constant 0 : index
    %2 = vector.load %arg1[%c0_1, %c0_2, %c0_3] : memref<2x42x100xf32, #tpu.memory_space<vmem>>, vector<1x42x96xf32>
    %3 = vector.shape_cast %2 : vector<1x42x96xf32> to vector<42x96xf32>
    %c0_4 = arith.constant 0 : index
    %c0_5 = arith.constant 0 : index
    %4 = vector.load %arg5[%c0_4, %c0_5] : memref<240x96xf32, #tpu.memory_space<vmem>>, vector<42x96xf32>
    tpu.vector_store %arg5[%c0_4, %c0_5], %3 {strides = array<i32>} : memref<240x96xf32, #tpu.memory_space<vmem>>, vector<42x96xf32>,
    %c0_6 = arith.constant 0 : index
    %c0_7 = arith.constant 0 : index
    %c1 = arith.constant 1 : index
    %5 = vector.load %arg1[%c0_6, %c0_7, %c1] : memref<2x42x100xf32, #tpu.memory_space<vmem>>, vector<1x42x96xf32>
    %6 = vector.shape_cast %5 : vector<1x42x96xf32> to vector<42x96xf32>
    %c48 = arith.constant 48 : index
    %c0_8 = arith.constant 0 : index
    %7 = vector.load %arg5[%c48, %c0_8] : memref<240x96xf32, #tpu.memory_space<vmem>>, vector<42x96xf32>
    tpu.vector_store %arg5[%c48, %c0_8], %6 {strides = array<i32>} : memref<240x96xf32, #tpu.memory_space<vmem>>, vector<42x96xf32>,
    %c0_9 = arith.constant 0 : index
    %c0_10 = arith.constant 0 : index
    %c2 = arith.constant 2 : index
    %8 = vector.load %arg1[%c0_9, %c0_10, %c2] : memref<2x42x100xf32, #tpu.memory_space<vmem>>, vector<1x42x96xf32>
    %9 = vector.shape_cast %8 : vector<1x42x96xf32> to vector<42x96xf32>
    %c96 = arith.constant 96 : index
    %c0_11 = arith.constant 0 : index
    %10 = vector.load %arg5[%c96, %c0_11] : memref<240x96xf32, #tpu.memory_space<vmem>>, vector<42x96xf32>
    tpu.vector_store %arg5[%c96, %c0_11], %9 {strides = array<i32>} : memref<240x96xf32, #tpu.memory_space<vmem>>, vector<42x96xf32>,
    %c0_12 = arith.constant 0 : index
    %c0_13 = arith.constant 0 : index
    %c3 = arith.constant 3 : index
    %11 = vector.load %arg1[%c0_12, %c0_13, %c3] : memref<2x42x100xf32, #tpu.memory_space<vmem>>, vector<1x42x96xf32>
    %12 = vector.shape_cast %11 : vector<1x42x96xf32> to vector<42x96xf32>
    %c144 = arith.constant 144 : index
    %c0_14 = arith.constant 0 : index
    %13 = vector.load %arg5[%c144, %c0_14] : memref<240x96xf32, #tpu.memory_space<vmem>>, vector<42x96xf32>
    tpu.vector_store %arg5[%c144, %c0_14], %12 {strides = array<i32>} : memref<240x96xf32, #tpu.memory_space<vmem>>, vector<42x96xf32>,
    %c0_15 = arith.constant 0 : index
    %c0_16 = arith.constant 0 : index
    %c4 = arith.constant 4 : index
    %14 = vector.load %arg1[%c0_15, %c0_16, %c4] : memref<2x42x100xf32, #tpu.memory_space<vmem>>, vector<1x42x96xf32>
    %15 = vector.shape_cast %14 : vector<1x42x96xf32> to vector<42x96xf32>
    %c192 = arith.constant 192 : index
    %c0_17 = arith.constant 0 : index
    %16 = vector.load %arg5[%c192, %c0_17] : memref<240x96xf32, #tpu.memory_space<vmem>>, vector<42x96xf32>
    tpu.vector_store %arg5[%c192, %c0_17], %15 {strides = array<i32>} : memref<240x96xf32, #tpu.memory_space<vmem>>, vector<42x96xf32>,
    %c0_18 = arith.constant 0 : index
    %c0_19 = arith.constant 0 : index
    %17 = vector.load %arg2[%c0_18, %c0_19] : memref<56x240xf32, #tpu.memory_space<vmem>>, vector<56x240xf32>
    %c0_20 = arith.constant 0 : index
    %c0_21 = arith.constant 0 : index
    %18 = vector.load %arg5[%c0_20, %c0_21] : memref<240x96xf32, #tpu.memory_space<vmem>>, vector<240x96xf32>
    %cst_22 = arith.constant dense<0.000000e+00> : vector<56x96xf32>
    %19 = tpu.matmul %17, %18, %cst_22 {dimension_numbers = #tpu.dot_dimension_numbers<[1], [0], [0], [1], [0, 0, 1, 1], [], []>} : vector<56x240xf32>, vector<240x96xf32>, vector<56x96xf32> -> vector<56x96xf32>
    %c0_23 = arith.constant 0 : index
    %c0_24 = arith.constant 0 : index
    %20 = vector.load %arg3[%c0_23, %c0_24] : memref<56x1xf32, #tpu.memory_space<vmem>>, vector<56x1xf32>
    %21 = vector.broadcast %20 : vector<56x1xf32> to vector<56x96xf32>
    %22 = arith.addf %19, %21 : vector<56x96xf32>
    %cst_25 = arith.constant 0.000000e+00 : f32
    %23 = vector.broadcast %cst_25 : f32 to vector<56x96xf32>
    %24 = arith.maximumf %22, %23 : vector<56x96xf32>
    %c0_26 = arith.constant 0 : index
    %c0_27 = arith.constant 0 : index
    %c0_28 = arith.constant 0 : index
    %c0_29 = arith.constant 0 : index
    %25 = vector.load %arg4[%c0_26, %c0_27, %c0_28, %c0_29] : memref<2x2x56x96xf32, #tpu.memory_space<vmem>>, vector<1x1x56x96xf32>
    %26 = vector.shape_cast %25 : vector<1x1x56x96xf32> to vector<56x96xf32>
    %27 = vector.shape_cast %24 : vector<56x96xf32> to vector<1x1x56x96xf32>
    tpu.vector_store %arg4[%c0_26, %c0_27, %c0_28, %c0_29], %27 {strides = array<i32>} : memref<2x2x56x96xf32, #tpu.memory_space<vmem>>, vector<1x1x56x96xf32>,
    %c0_30 = arith.constant 0 : index
    %c1_31 = arith.constant 1 : index
    %c0_32 = arith.constant 0 : index
    %c0_33 = arith.constant 0 : index
    %28 = vector.load %arg4[%c0_30, %c1_31, %c0_32, %c0_33] : memref<2x2x56x96xf32, #tpu.memory_space<vmem>>, vector<1x1x56x96xf32>
    %29 = vector.shape_cast %28 : vector<1x1x56x96xf32> to vector<56x96xf32>
    %30 = vector.shape_cast %24 : vector<56x96xf32> to vector<1x1x56x96xf32>
    tpu.vector_store %arg4[%c0_30, %c1_31, %c0_32, %c0_33], %30 {strides = array<i32>} : memref<2x2x56x96xf32, #tpu.memory_space<vmem>>, vector<1x1x56x96xf32>,
    %c1_34 = arith.constant 1 : index
    %c0_35 = arith.constant 0 : index
    %c0_36 = arith.constant 0 : index
    %31 = vector.load %arg1[%c1_34, %c0_35, %c0_36] : memref<2x42x100xf32, #tpu.memory_space<vmem>>, vector<1x42x96xf32>
    %32 = vector.shape_cast %31 : vector<1x42x96xf32> to vector<42x96xf32>
    %c0_37 = arith.constant 0 : index
    %c0_38 = arith.constant 0 : index
    %33 = vector.load %arg5[%c0_37, %c0_38] : memref<240x96xf32, #tpu.memory_space<vmem>>, vector<42x96xf32>
    tpu.vector_store %arg5[%c0_37, %c0_38], %32 {strides = array<i32>} : memref<240x96xf32, #tpu.memory_space<vmem>>, vector<42x96xf32>,
    %c1_39 = arith.constant 1 : index
    %c0_40 = arith.constant 0 : index
    %c1_41 = arith.constant 1 : index
    %34 = vector.load %arg1[%c1_39, %c0_40, %c1_41] : memref<2x42x100xf32, #tpu.memory_space<vmem>>, vector<1x42x96xf32>
    %35 = vector.shape_cast %34 : vector<1x42x96xf32> to vector<42x96xf32>
    %c48_42 = arith.constant 48 : index
    %c0_43 = arith.constant 0 : index
    %36 = vector.load %arg5[%c48_42, %c0_43] : memref<240x96xf32, #tpu.memory_space<vmem>>, vector<42x96xf32>
    tpu.vector_store %arg5[%c48_42, %c0_43], %35 {strides = array<i32>} : memref<240x96xf32, #tpu.memory_space<vmem>>, vector<42x96xf32>,
    %c1_44 = arith.constant 1 : index
    %c0_45 = arith.constant 0 : index
    %c2_46 = arith.constant 2 : index
    %37 = vector.load %arg1[%c1_44, %c0_45, %c2_46] : memref<2x42x100xf32, #tpu.memory_space<vmem>>, vector<1x42x96xf32>
    %38 = vector.shape_cast %37 : vector<1x42x96xf32> to vector<42x96xf32>
    %c96_47 = arith.constant 96 : index
    %c0_48 = arith.constant 0 : index
    %39 = vector.load %arg5[%c96_47, %c0_48] : memref<240x96xf32, #tpu.memory_space<vmem>>, vector<42x96xf32>
    tpu.vector_store %arg5[%c96_47, %c0_48], %38 {strides = array<i32>} : memref<240x96xf32, #tpu.memory_space<vmem>>, vector<42x96xf32>,
    %c1_49 = arith.constant 1 : index
    %c0_50 = arith.constant 0 : index
    %c3_51 = arith.constant 3 : index
    %40 = vector.load %arg1[%c1_49, %c0_50, %c3_51] : memref<2x42x100xf32, #tpu.memory_space<vmem>>, vector<1x42x96xf32>
    %41 = vector.shape_cast %40 : vector<1x42x96xf32> to vector<42x96xf32>
    %c144_52 = arith.constant 144 : index
    %c0_53 = arith.constant 0 : index
    %42 = vector.load %arg5[%c144_52, %c0_53] : memref<240x96xf32, #tpu.memory_space<vmem>>, vector<42x96xf32>
    tpu.vector_store %arg5[%c144_52, %c0_53], %41 {strides = array<i32>} : memref<240x96xf32, #tpu.memory_space<vmem>>, vector<42x96xf32>,
    %c1_54 = arith.constant 1 : index
    %c0_55 = arith.constant 0 : index
    %c4_56 = arith.constant 4 : index
    %43 = vector.load %arg1[%c1_54, %c0_55, %c4_56] : memref<2x42x100xf32, #tpu.memory_space<vmem>>, vector<1x42x96xf32>
    %44 = vector.shape_cast %43 : vector<1x42x96xf32> to vector<42x96xf32>
    %c192_57 = arith.constant 192 : index
    %c0_58 = arith.constant 0 : index
    %45 = vector.load %arg5[%c192_57, %c0_58] : memref<240x96xf32, #tpu.memory_space<vmem>>, vector<42x96xf32>
    tpu.vector_store %arg5[%c192_57, %c0_58], %44 {strides = array<i32>} : memref<240x96xf32, #tpu.memory_space<vmem>>, vector<42x96xf32>,
    %c0_59 = arith.constant 0 : index
    %c0_60 = arith.constant 0 : index
    %46 = vector.load %arg2[%c0_59, %c0_60] : memref<56x240xf32, #tpu.memory_space<vmem>>, vector<56x240xf32>
    %c0_61 = arith.constant 0 : index
    %c0_62 = arith.constant 0 : index
    %47 = vector.load %arg5[%c0_61, %c0_62] : memref<240x96xf32, #tpu.memory_space<vmem>>, vector<240x96xf32>
    %cst_63 = arith.constant dense<0.000000e+00> : vector<56x96xf32>
    %48 = tpu.matmul %46, %47, %cst_63 {dimension_numbers = #tpu.dot_dimension_numbers<[1], [0], [0], [1], [0, 0, 1, 1], [], []>} : vector<56x240xf32>, vector<240x96xf32>, vector<56x96xf32> -> vector<56x96xf32>
    %c0_64 = arith.constant 0 : index
    %c0_65 = arith.constant 0 : index
    %49 = vector.load %arg3[%c0_64, %c0_65] : memref<56x1xf32, #tpu.memory_space<vmem>>, vector<56x1xf32>
    %50 = vector.broadcast %49 : vector<56x1xf32> to vector<56x96xf32>
    %51 = arith.addf %48, %50 : vector<56x96xf32>
    %cst_66 = arith.constant 0.000000e+00 : f32
    %52 = vector.broadcast %cst_66 : f32 to vector<56x96xf32>
    %53 = arith.maximumf %51, %52 : vector<56x96xf32>
    %c1_67 = arith.constant 1 : index
    %c0_68 = arith.constant 0 : index
    %c0_69 = arith.constant 0 : index
    %c0_70 = arith.constant 0 : index
    %54 = vector.load %arg4[%c1_67, %c0_68, %c0_69, %c0_70] : memref<2x2x56x96xf32, #tpu.memory_space<vmem>>, vector<1x1x56x96xf32>
    %55 = vector.shape_cast %54 : vector<1x1x56x96xf32> to vector<56x96xf32>
    %56 = vector.shape_cast %53 : vector<56x96xf32> to vector<1x1x56x96xf32>
    tpu.vector_store %arg4[%c1_67, %c0_68, %c0_69, %c0_70], %56 {strides = array<i32>} : memref<2x2x56x96xf32, #tpu.memory_space<vmem>>, vector<1x1x56x96xf32>,
    %c1_71 = arith.constant 1 : index
    %c1_72 = arith.constant 1 : index
    %c0_73 = arith.constant 0 : index
    %c0_74 = arith.constant 0 : index
    %57 = vector.load %arg4[%c1_71, %c1_72, %c0_73, %c0_74] : memref<2x2x56x96xf32, #tpu.memory_space<vmem>>, vector<1x1x56x96xf32>
    %58 = vector.shape_cast %57 : vector<1x1x56x96xf32> to vector<56x96xf32>
    %59 = vector.shape_cast %53 : vector<56x96xf32> to vector<1x1x56x96xf32>
    tpu.vector_store %arg4[%c1_71, %c1_72, %c0_73, %c0_74], %59 {strides = array<i32>} : memref<2x2x56x96xf32, #tpu.memory_space<vmem>>, vector<1x1x56x96xf32>,
    return
  }
  func.func @transform_0(%arg0: i32) -> (i32, i32, i32) {
    %c0_i32 = arith.constant 0 : i32
    %c0_i32_0 = arith.constant 0 : i32
    %c0_i32_1 = arith.constant 0 : i32
    %c0_i32_2 = arith.constant 0 : i32
    return %c0_i32, %c0_i32_0, %c0_i32_1 : i32, i32, i32
  }
  func.func @transform_1(%arg0: i32) -> (i32, i32) {
    %c0_i32 = arith.constant 0 : i32
    %c0_i32_0 = arith.constant 0 : i32
    %c0_i32_1 = arith.constant 0 : i32
    return %c0_i32, %c0_i32_0 : i32, i32
  }
  func.func @transform_2(%arg0: i32) -> (i32, i32) {
    %c0_i32 = arith.constant 0 : i32
    %c0_i32_0 = arith.constant 0 : i32
    %c0_i32_1 = arith.constant 0 : i32
    return %c0_i32, %c0_i32_0 : i32, i32
  }
  func.func @transform_3(%arg0: i32) -> (i32, i32, i32, i32) {
    %c0_i32 = arith.constant 0 : i32
    %c0_i32_0 = arith.constant 0 : i32
    %c0_i32_1 = arith.constant 0 : i32
    %c0_i32_2 = arith.constant 0 : i32
    %c0_i32_3 = arith.constant 0 : i32
    return %c0_i32, %c0_i32_0, %c0_i32_1, %c0_i32_2 : i32, i32, i32, i32
  }
}

</mosaic_0001>

<llo_original>
// kernel: model_forward.1
$region0: #{model_forward.1}
  #allocation0 [shape = 'u32[]', space=smem, size = 0x4, offset = 0x4, fixed_abs, tag = 'smem constant byte address 0x4 - core index']
  #allocation1 [shape = 'u32[144,128]{1,0:T(1,128)}', space=vmem, size = 0x12000, scoped, tag = 'internal scratch']
  #allocation2 [shape = 'f32[240,96]{1,0:T(8,128)}', space=vmem, size = 0x1e000, scoped, tag = 'scratch operand']
  %s0 = inlined_call_operand.vmem [shape: f32[2,42,100], index: 0, kind: input, shape index: {}]
  %s1 = inlined_call_operand.vmem [shape: f32[56,240], index: 1, kind: input, shape index: {}]
  %s2 = inlined_call_operand.vmem [shape: f32[56,1], index: 2, kind: input, shape index: {}]
  %s3 = inlined_call_operand.vmem [shape: f32[2,2,56,96], index: 3, kind: output, shape index: {}]
  %s4 = sld [smem:[#allocation0]]
  $region22: #{model_forward.1} parent=0
    _
  %s6 = ssub.s32 1, %s4
  %s7 = scalar_select 0, %s6, %s4
  // Predicated region
  $region2: #{model_forward.1} parent=0 // pred_check
    _
  $region3: #{model_forward.1} parent=0 // pred_check_branch
    %9 = sbr.rel (0) target = $region5
  $region4: #{model_forward.1} parent=0 // pred_region
    _
  $region5: #{model_forward.1} parent=0 // pred_fallthru
    _
  // Predicated region
  $region6: #{model_forward.1} parent=0 // pred_check
    _
  $region7: #{model_forward.1} parent=0 // pred_check_branch
    %11 = sbr.rel (0) target = $region9
  $region8: #{model_forward.1} parent=0 // pred_region
    _
  $region9: #{model_forward.1} parent=0 // pred_fallthru
    _
  // Predicated region
  $region10: #{model_forward.1} parent=0 // pred_check
    _
  $region11: #{model_forward.1} parent=0 // pred_check_branch
    %13 = sbr.rel (0) target = $region13
  $region12: #{model_forward.1} parent=0 // pred_region
    _
  $region13: #{model_forward.1} parent=0 // pred_fallthru
    _
  %vm14 = vcmask 785408
  %15 = vst.msk [vmem:[#allocation2] sm:$0xff] %vm14, 0.0
  %16 = vst.msk [vmem:[#allocation2 + $0x8] sm:$0xff] %vm14, 0.0
  %17 = vst.msk [vmem:[#allocation2 + $0x10] sm:$0xff] %vm14, 0.0
  %18 = vst.msk [vmem:[#allocation2 + $0x18] sm:$0xff] %vm14, 0.0
  %19 = vst.msk [vmem:[#allocation2 + $0x20] sm:$0xff] %vm14, 0.0
  %20 = vst.msk [vmem:[#allocation2 + $0x28] sm:$0xff] %vm14, 0.0
  %21 = vst.msk [vmem:[#allocation2 + $0x30] sm:$0xff] %vm14, 0.0
  %22 = vst.msk [vmem:[#allocation2 + $0x38] sm:$0xff] %vm14, 0.0
  %23 = vst.msk [vmem:[#allocation2 + $0x40] sm:$0xff] %vm14, 0.0
  %24 = vst.msk [vmem:[#allocation2 + $0x48] sm:$0xff] %vm14, 0.0
  %25 = vst.msk [vmem:[#allocation2 + $0x50] sm:$0xff] %vm14, 0.0
  %26 = vst.msk [vmem:[#allocation2 + $0x58] sm:$0xff] %vm14, 0.0
  %27 = vst.msk [vmem:[#allocation2 + $0x60] sm:$0xff] %vm14, 0.0
  %28 = vst.msk [vmem:[#allocation2 + $0x68] sm:$0xff] %vm14, 0.0
  %29 = vst.msk [vmem:[#allocation2 + $0x70] sm:$0xff] %vm14, 0.0
  %30 = vst.msk [vmem:[#allocation2 + $0x78] sm:$0xff] %vm14, 0.0
  %31 = vst.msk [vmem:[#allocation2 + $0x80] sm:$0xff] %vm14, 0.0
  %32 = vst.msk [vmem:[#allocation2 + $0x88] sm:$0xff] %vm14, 0.0
  %33 = vst.msk [vmem:[#allocation2 + $0x90] sm:$0xff] %vm14, 0.0
  %34 = vst.msk [vmem:[#allocation2 + $0x98] sm:$0xff] %vm14, 0.0
  %35 = vst.msk [vmem:[#allocation2 + $0xa0] sm:$0xff] %vm14, 0.0
  %36 = vst.msk [vmem:[#allocation2 + $0xa8] sm:$0xff] %vm14, 0.0
  %37 = vst.msk [vmem:[#allocation2 + $0xb0] sm:$0xff] %vm14, 0.0
  %38 = vst.msk [vmem:[#allocation2 + $0xb8] sm:$0xff] %vm14, 0.0
  %39 = vst.msk [vmem:[#allocation2 + $0xc0] sm:$0xff] %vm14, 0.0
  %40 = vst.msk [vmem:[#allocation2 + $0xc8] sm:$0xff] %vm14, 0.0
  %41 = vst.msk [vmem:[#allocation2 + $0xd0] sm:$0xff] %vm14, 0.0
  %42 = vst.msk [vmem:[#allocation2 + $0xd8] sm:$0xff] %vm14, 0.0
  %43 = vst.msk [vmem:[#allocation2 + $0xe0] sm:$0xff] %vm14, 0.0
  %44 = vst.msk [vmem:[#allocation2 + $0xe8] sm:$0xff] %vm14, 0.0
  %v45 = vld [vmem:[%s0] sm:$0xff]
  %v46 = vld [vmem:[%s0 + $0x8] sm:$0xff]
  %v47 = vld [vmem:[%s0 + $0x10] sm:$0xff]
  %v48 = vld [vmem:[%s0 + $0x18] sm:$0xff]
  %v49 = vld [vmem:[%s0 + $0x20] sm:$0xff]
  %v50 = vld [vmem:[%s0 + $0x28] sm:$0x3]
  %51 = vst.msk [vmem:[#allocation2] sm:$0xff] %vm14, %v45
  %52 = vst.msk [vmem:[#allocation2 + $0x8] sm:$0xff] %vm14, %v46
  %53 = vst.msk [vmem:[#allocation2 + $0x10] sm:$0xff] %vm14, %v47
  %54 = vst.msk [vmem:[#allocation2 + $0x18] sm:$0xff] %vm14, %v48
  %55 = vst.msk [vmem:[#allocation2 + $0x20] sm:$0xff] %vm14, %v49
  %vm56 = vcmask 779264
  %57 = vst.msk [vmem:[#allocation2 + $0x28] sm:$0x3] %vm56, %v50
  %v58 = vld [vmem:[%s0] sm:$0xff]
  %v59 = vld [vmem:[%s0 + $0x8] sm:$0xff]
  %v60 = vld [vmem:[%s0 + $0x10] sm:$0xff]
  %v61 = vld [vmem:[%s0 + $0x18] sm:$0xff]
  %v62 = vld [vmem:[%s0 + $0x20] sm:$0xff]
  %v63 = vld [vmem:[%s0 + $0x28] sm:$0x3]
  %70 = vrot.lane.b32.xlu0 %v58, 127
  %v71 = vpop.permute.xlu0 %70
  %72 = vrot.lane.b32.xlu0 %v59, 127
  %v73 = vpop.permute.xlu0 %72
  %74 = vrot.lane.b32.xlu0 %v60, 127
  %v75 = vpop.permute.xlu0 %74
  %76 = vrot.lane.b32.xlu0 %v61, 127
  %v77 = vpop.permute.xlu0 %76
  %78 = vrot.lane.b32.xlu0 %v62, 127
  %v79 = vpop.permute.xlu0 %78
  %80 = vrot.lane.b32.xlu0 %v63, 127
  %v81 = vpop.permute.xlu0 %80
  %88 = vst.msk [vmem:[#allocation2 + $0x30] sm:$0xff] %vm14, %v71
  %89 = vst.msk [vmem:[#allocation2 + $0x38] sm:$0xff] %vm14, %v73
  %90 = vst.msk [vmem:[#allocation2 + $0x40] sm:$0xff] %vm14, %v75
  %91 = vst.msk [vmem:[#allocation2 + $0x48] sm:$0xff] %vm14, %v77
  %92 = vst.msk [vmem:[#allocation2 + $0x50] sm:$0xff] %vm14, %v79
  %93 = vst.msk [vmem:[#allocation2 + $0x58] sm:$0x3] %vm56, %v81
  %v94 = vld [vmem:[%s0] sm:$0xff]
  %v95 = vld [vmem:[%s0 + $0x8] sm:$0xff]
  %v96 = vld [vmem:[%s0 + $0x10] sm:$0xff]
  %v97 = vld [vmem:[%s0 + $0x18] sm:$0xff]
  %v98 = vld [vmem:[%s0 + $0x20] sm:$0xff]
  %v99 = vld [vmem:[%s0 + $0x28] sm:$0x3]
  %106 = vrot.lane.b32.xlu0 %v94, 126
  %v107 = vpop.permute.xlu0 %106
  %108 = vrot.lane.b32.xlu0 %v95, 126
  %v109 = vpop.permute.xlu0 %108
  %110 = vrot.lane.b32.xlu0 %v96, 126
  %v111 = vpop.permute.xlu0 %110
  %112 = vrot.lane.b32.xlu0 %v97, 126
  %v113 = vpop.permute.xlu0 %112
  %114 = vrot.lane.b32.xlu0 %v98, 126
  %v115 = vpop.permute.xlu0 %114
  %116 = vrot.lane.b32.xlu0 %v99, 126
  %v117 = vpop.permute.xlu0 %116
  %124 = vst.msk [vmem:[#allocation2 + $0x60] sm:$0xff] %vm14, %v107
  %125 = vst.msk [vmem:[#allocation2 + $0x68] sm:$0xff] %vm14, %v109
  %126 = vst.msk [vmem:[#allocation2 + $0x70] sm:$0xff] %vm14, %v111
  %127 = vst.msk [vmem:[#allocation2 + $0x78] sm:$0xff] %vm14, %v113
  %128 = vst.msk [vmem:[#allocation2 + $0x80] sm:$0xff] %vm14, %v115
  %129 = vst.msk [vmem:[#allocation2 + $0x88] sm:$0x3] %vm56, %v117
  %v130 = vld [vmem:[%s0] sm:$0xff]
  %v131 = vld [vmem:[%s0 + $0x8] sm:$0xff]
  %v132 = vld [vmem:[%s0 + $0x10] sm:$0xff]
  %v133 = vld [vmem:[%s0 + $0x18] sm:$0xff]
  %v134 = vld [vmem:[%s0 + $0x20] sm:$0xff]
  %v135 = vld [vmem:[%s0 + $0x28] sm:$0x3]
  %142 = vrot.lane.b32.xlu0 %v130, 125
  %v143 = vpop.permute.xlu0 %142
  %144 = vrot.lane.b32.xlu0 %v131, 125
  %v145 = vpop.permute.xlu0 %144
  %146 = vrot.lane.b32.xlu0 %v132, 125
  %v147 = vpop.permute.xlu0 %146
  %148 = vrot.lane.b32.xlu0 %v133, 125
  %v149 = vpop.permute.xlu0 %148
  %150 = vrot.lane.b32.xlu0 %v134, 125
  %v151 = vpop.permute.xlu0 %150
  %152 = vrot.lane.b32.xlu0 %v135, 125
  %v153 = vpop.permute.xlu0 %152
  %160 = vst.msk [vmem:[#allocation2 + $0x90] sm:$0xff] %vm14, %v143
  %161 = vst.msk [vmem:[#allocation2 + $0x98] sm:$0xff] %vm14, %v145
  %162 = vst.msk [vmem:[#allocation2 + $0xa0] sm:$0xff] %vm14, %v147
  %163 = vst.msk [vmem:[#allocation2 + $0xa8] sm:$0xff] %vm14, %v149
  %164 = vst.msk [vmem:[#allocation2 + $0xb0] sm:$0xff] %vm14, %v151
  %165 = vst.msk [vmem:[#allocation2 + $0xb8] sm:$0x3] %vm56, %v153
  %v166 = vld [vmem:[%s0] sm:$0xff]
  %v167 = vld [vmem:[%s0 + $0x8] sm:$0xff]
  %v168 = vld [vmem:[%s0 + $0x10] sm:$0xff]
  %v169 = vld [vmem:[%s0 + $0x18] sm:$0xff]
  %v170 = vld [vmem:[%s0 + $0x20] sm:$0xff]
  %v171 = vld [vmem:[%s0 + $0x28] sm:$0x3]
  %178 = vrot.lane.b32.xlu0 %v166, 124
  %v179 = vpop.permute.xlu0 %178
  %180 = vrot.lane.b32.xlu0 %v167, 124
  %v181 = vpop.permute.xlu0 %180
  %182 = vrot.lane.b32.xlu0 %v168, 124
  %v183 = vpop.permute.xlu0 %182
  %184 = vrot.lane.b32.xlu0 %v169, 124
  %v185 = vpop.permute.xlu0 %184
  %186 = vrot.lane.b32.xlu0 %v170, 124
  %v187 = vpop.permute.xlu0 %186
  %188 = vrot.lane.b32.xlu0 %v171, 124
  %v189 = vpop.permute.xlu0 %188
  %196 = vst.msk [vmem:[#allocation2 + $0xc0] sm:$0xff] %vm14, %v179
  %197 = vst.msk [vmem:[#allocation2 + $0xc8] sm:$0xff] %vm14, %v181
  %198 = vst.msk [vmem:[#allocation2 + $0xd0] sm:$0xff] %vm14, %v183
  %199 = vst.msk [vmem:[#allocation2 + $0xd8] sm:$0xff] %vm14, %v185
  %200 = vst.msk [vmem:[#allocation2 + $0xe0] sm:$0xff] %vm14, %v187
  %201 = vst.msk [vmem:[#allocation2 + $0xe8] sm:$0x3] %vm56, %v189
  %v202 = vld [vmem:[%s1] sm:$0xff]
  %v203 = vld [vmem:[%s1 + $0x8] sm:$0xff]
  %v204 = vld [vmem:[%s1 + $0x10] sm:$0xff]
  %v205 = vld [vmem:[%s1 + $0x18] sm:$0xff]
  %v206 = vld [vmem:[%s1 + $0x20] sm:$0xff]
  %v207 = vld [vmem:[%s1 + $0x28] sm:$0xff]
  %v208 = vld [vmem:[%s1 + $0x30] sm:$0xff]
  %v209 = vld [vmem:[%s1 + $0x38] sm:$0xff]
  %v210 = vld [vmem:[%s1 + $0x40] sm:$0xff]
  %v211 = vld [vmem:[%s1 + $0x48] sm:$0xff]
  %v212 = vld [vmem:[%s1 + $0x50] sm:$0xff]
  %v213 = vld [vmem:[%s1 + $0x58] sm:$0xff]
  %v214 = vld [vmem:[%s1 + $0x60] sm:$0xff]
  %v215 = vld [vmem:[%s1 + $0x68] sm:$0xff]
  %v216 = vld [vmem:[#allocation2] sm:$0xff]
  %v217 = vld [vmem:[#allocation2 + $0x8] sm:$0xff]
  %v218 = vld [vmem:[#allocation2 + $0x10] sm:$0xff]
  %v219 = vld [vmem:[#allocation2 + $0x18] sm:$0xff]
  %v220 = vld [vmem:[#allocation2 + $0x20] sm:$0xff]
  %v221 = vld [vmem:[#allocation2 + $0x28] sm:$0xff]
  %v222 = vld [vmem:[#allocation2 + $0x30] sm:$0xff]
  %v223 = vld [vmem:[#allocation2 + $0x38] sm:$0xff]
  %v224 = vld [vmem:[#allocation2 + $0x40] sm:$0xff]
  %v225 = vld [vmem:[#allocation2 + $0x48] sm:$0xff]
  %v226 = vld [vmem:[#allocation2 + $0x50] sm:$0xff]
  %v227 = vld [vmem:[#allocation2 + $0x58] sm:$0xff]
  %v228 = vld [vmem:[#allocation2 + $0x60] sm:$0xff]
  %v229 = vld [vmem:[#allocation2 + $0x68] sm:$0xff]
  %v230 = vld [vmem:[#allocation2 + $0x70] sm:$0xff]
  %v231 = vld [vmem:[#allocation2 + $0x78] sm:$0xff]
  %v232 = vld [vmem:[#allocation2 + $0x80] sm:$0xff]
  %v233 = vld [vmem:[#allocation2 + $0x88] sm:$0xff]
  %v234 = vld [vmem:[#allocation2 + $0x90] sm:$0xff]
  %v235 = vld [vmem:[#allocation2 + $0x98] sm:$0xff]
  %v236 = vld [vmem:[#allocation2 + $0xa0] sm:$0xff]
  %v237 = vld [vmem:[#allocation2 + $0xa8] sm:$0xff]
  %v238 = vld [vmem:[#allocation2 + $0xb0] sm:$0xff]
  %v239 = vld [vmem:[#allocation2 + $0xb8] sm:$0xff]
  %v240 = vld [vmem:[#allocation2 + $0xc0] sm:$0xff]
  %v241 = vld [vmem:[#allocation2 + $0xc8] sm:$0xff]
  %v242 = vld [vmem:[#allocation2 + $0xd0] sm:$0xff]
  %v243 = vld [vmem:[#allocation2 + $0xd8] sm:$0xff]
  %v244 = vld [vmem:[#allocation2 + $0xe0] sm:$0xff]
  %v245 = vld [vmem:[#allocation2 + $0xe8] sm:$0xff]
  %v246 = vld [vmem:[%s2] sm:$0xff]
  %v247 = vld [vmem:[%s2 + $0x8] sm:$0xff]
  %v248 = vld [vmem:[%s2 + $0x10] sm:$0xff]
  %v249 = vld [vmem:[%s2 + $0x18] sm:$0xff]
  %v250 = vld [vmem:[%s2 + $0x20] sm:$0xff]
  %v251 = vld [vmem:[%s2 + $0x28] sm:$0xff]
  %v252 = vld [vmem:[%s2 + $0x30] sm:$0xff]
  %254 = vset.pattern.permute.xlu0 0
  %255 = vperm.xlu0 %254, %v246
  %v256 = vpop.permute.xlu0 %255
  %259 = vset.pattern.permute.xlu0 0
  %260 = vperm.xlu0 %259, %v247
  %v261 = vpop.permute.xlu0 %260
  %264 = vset.pattern.permute.xlu0 0
  %265 = vperm.xlu0 %264, %v248
  %v266 = vpop.permute.xlu0 %265
  %269 = vset.pattern.permute.xlu0 0
  %270 = vperm.xlu0 %269, %v249
  %v271 = vpop.permute.xlu0 %270
  %274 = vset.pattern.permute.xlu0 0
  %275 = vperm.xlu0 %274, %v250
  %v276 = vpop.permute.xlu0 %275
  %279 = vset.pattern.permute.xlu0 0
  %280 = vperm.xlu0 %279, %v251
  %v281 = vpop.permute.xlu0 %280
  %284 = vset.pattern.permute.xlu0 0
  %285 = vperm.xlu0 %284, %v252
  %v286 = vpop.permute.xlu0 %285
  %vm288 = vcmask 916480
  %v290 = vsel %vm288, %v203, 0
  %v293 = vsel %vm288, %v205, 0
  %v296 = vsel %vm288, %v207, 0
  %v299 = vsel %vm288, %v209, 0
  %v302 = vsel %vm288, %v211, 0
  %v305 = vsel %vm288, %v213, 0
  %v308 = vsel %vm288, %v215, 0
  %310 = vmatprep.subr.mxu0 0.0
  %311 = vmatpush1.msra.mxu0 %v231
  %312 = vmatprep.subr.mxu0 0.0
  %313 = vmatpush1.msra.mxu0 %v230
  %314 = vmatprep.subr.mxu0 0.0
  %315 = vmatpush1.msra.mxu0 %v229
  %316 = vmatprep.subr.mxu0 0.0
  %317 = vmatpush1.msra.mxu0 %v228
  %318 = vmatprep.subr.mxu0 0.0
  %319 = vmatpush1.msra.mxu0 %v227
  %320 = vmatprep.subr.mxu0 0.0
  %321 = vmatpush1.msra.mxu0 %v226
  %322 = vmatprep.subr.mxu0 0.0
  %323 = vmatpush1.msra.mxu0 %v225
  %324 = vmatprep.subr.mxu0 0.0
  %325 = vmatpush1.msra.mxu0 %v224
  %326 = vmatprep.subr.mxu0 0.0
  %327 = vmatpush1.msra.mxu0 %v223
  %328 = vmatprep.subr.mxu0 0.0
  %329 = vmatpush1.msra.mxu0 %v222
  %330 = vmatprep.subr.mxu0 0.0
  %331 = vmatpush1.msra.mxu0 %v221
  %332 = vmatprep.subr.mxu0 0.0
  %333 = vmatpush1.msra.mxu0 %v220
  %334 = vmatprep.subr.mxu0 0.0
  %335 = vmatpush1.msra.mxu0 %v219
  %336 = vmatprep.subr.mxu0 0.0
  %337 = vmatpush1.msra.mxu0 %v218
  %338 = vmatprep.subr.mxu0 0.0
  %339 = vmatpush1.msra.mxu0 %v217
  %340 = vmatprep.subr.mxu0 0.0
  %341 = vmatpush1.msra.mxu0 %v216
  %342 = vmatprep.subr.mxu0 0.0
  %343 = vmatpush2.msra.mxu0 0.0
  %344 = vmatprep.subr.mxu0 0.0
  %345 = vmatpush2.msra.mxu0 0.0
  %346 = vmatprep.subr.mxu0 0.0
  %347 = vmatpush2.msra.mxu0 %v245
  %348 = vmatprep.subr.mxu0 0.0
  %349 = vmatpush2.msra.mxu0 %v244
  %350 = vmatprep.subr.mxu0 0.0
  %351 = vmatpush2.msra.mxu0 %v243
  %352 = vmatprep.subr.mxu0 0.0
  %353 = vmatpush2.msra.mxu0 %v242
  %354 = vmatprep.subr.mxu0 0.0
  %355 = vmatpush2.msra.mxu0 %v241
  %356 = vmatprep.subr.mxu0 0.0
  %357 = vmatpush2.msra.mxu0 %v240
  %358 = vmatprep.subr.mxu0 0.0
  %359 = vmatpush2.msra.mxu0 %v239
  %360 = vmatprep.subr.mxu0 0.0
  %361 = vmatpush2.msra.mxu0 %v238
  %362 = vmatprep.subr.mxu0 0.0
  %363 = vmatpush2.msra.mxu0 %v237
  %364 = vmatprep.subr.mxu0 0.0
  %365 = vmatpush2.msra.mxu0 %v236
  %366 = vmatprep.subr.mxu0 0.0
  %367 = vmatpush2.msra.mxu0 %v235
  %368 = vmatprep.subr.mxu0 0.0
  %369 = vmatpush2.msra.mxu0 %v234
  %370 = vmatprep.subr.mxu0 0.0
  %371 = vmatpush2.msra.mxu0 %v233
  %372 = vmatprep.subr.mxu0 0.0
  %373 = vmatpush2.msra.mxu0 %v232
  %374 = vmatprep.mubr.f32.mxu0 %v290
  %375 = vmatmul.mubr.f32.gmra.mxu0 %v202
  %v376 = vpop.f32.mrf.mxu0
  %v377 = vadd.f32 %v256, %v376
  %v378 = vpop.f32.mrf.mxu0
  %379 = vmatprep.mubr.f32.mxu0 %v293
  %380 = vmatmul.mubr.f32.gmra.mxu0 %v204
  %v381 = vpop.f32.mrf.mxu0
  %v382 = vadd.f32 %v261, %v381
  %v383 = vpop.f32.mrf.mxu0
  %384 = vmatprep.mubr.f32.mxu0 %v296
  %385 = vmatmul.mubr.f32.gmra.mxu0 %v206
  %v386 = vpop.f32.mrf.mxu0
  %v387 = vadd.f32 %v266, %v386
  %v388 = vpop.f32.mrf.mxu0
  %389 = vmatprep.mubr.f32.mxu0 %v299
  %390 = vmatmul.mubr.f32.gmra.mxu0 %v208
  %v391 = vpop.f32.mrf.mxu0
  %v392 = vadd.f32 %v271, %v391
  %v393 = vpop.f32.mrf.mxu0
  %394 = vmatprep.mubr.f32.mxu0 %v302
  %395 = vmatmul.mubr.f32.gmra.mxu0 %v210
  %v396 = vpop.f32.mrf.mxu0
  %v397 = vadd.f32 %v276, %v396
  %v398 = vpop.f32.mrf.mxu0
  %399 = vmatprep.mubr.f32.mxu0 %v305
  %400 = vmatmul.mubr.f32.gmra.mxu0 %v212
  %v401 = vpop.f32.mrf.mxu0
  %v402 = vadd.f32 %v281, %v401
  %v403 = vpop.f32.mrf.mxu0
  %404 = vmatprep.mubr.f32.mxu0 %v308
  %405 = vmatmul.mubr.f32.gmra.mxu0 %v214
  %v406 = vpop.f32.mrf.mxu0
  %v407 = vadd.f32 %v286, %v406
  %v408 = vpop.f32.mrf.mxu0
  %409 = vdwg.mxu0
  %v410 = vmax.f32 %v377, 0.0
  %v411 = vmax.f32 %v382, 0.0
  %v412 = vmax.f32 %v387, 0.0
  %v413 = vmax.f32 %v392, 0.0
  %v414 = vmax.f32 %v397, 0.0
  %v415 = vmax.f32 %v402, 0.0
  %v416 = vmax.f32 %v407, 0.0
  %417 = vst.msk [vmem:[%s3] sm:$0xff] %vm14, %v410
  %418 = vst.msk [vmem:[%s3 + $0x8] sm:$0xff] %vm14, %v411
  %419 = vst.msk [vmem:[%s3 + $0x10] sm:$0xff] %vm14, %v412
  %420 = vst.msk [vmem:[%s3 + $0x18] sm:$0xff] %vm14, %v413
  %421 = vst.msk [vmem:[%s3 + $0x20] sm:$0xff] %vm14, %v414
  %422 = vst.msk [vmem:[%s3 + $0x28] sm:$0xff] %vm14, %v415
  %423 = vst.msk [vmem:[%s3 + $0x30] sm:$0xff] %vm14, %v416
  %s424 = scalar_lea.vmem %s3, 56
  %425 = vst.msk [vmem:[%s424] sm:$0xff] %vm14, %v410
  %426 = vst.msk [vmem:[%s424 + $0x8] sm:$0xff] %vm14, %v411
  %427 = vst.msk [vmem:[%s424 + $0x10] sm:$0xff] %vm14, %v412
  %428 = vst.msk [vmem:[%s424 + $0x18] sm:$0xff] %vm14, %v413
  %429 = vst.msk [vmem:[%s424 + $0x20] sm:$0xff] %vm14, %v414
  %430 = vst.msk [vmem:[%s424 + $0x28] sm:$0xff] %vm14, %v415
  %431 = vst.msk [vmem:[%s424 + $0x30] sm:$0xff] %vm14, %v416
  %s432 = scalar_lea.vmem %s0, 48
  %v433 = vld [vmem:[%s432] sm:$0xff]
  %v434 = vld [vmem:[%s432 + $0x8] sm:$0xff]
  %v435 = vld [vmem:[%s432 + $0x10] sm:$0xff]
  %v436 = vld [vmem:[%s432 + $0x18] sm:$0xff]
  %v437 = vld [vmem:[%s432 + $0x20] sm:$0xff]
  %v438 = vld [vmem:[%s432 + $0x28] sm:$0x3]
  %439 = vst.msk [vmem:[#allocation2] sm:$0xff] %vm14, %v433
  %440 = vst.msk [vmem:[#allocation2 + $0x8] sm:$0xff] %vm14, %v434
  %441 = vst.msk [vmem:[#allocation2 + $0x10] sm:$0xff] %vm14, %v435
  %442 = vst.msk [vmem:[#allocation2 + $0x18] sm:$0xff] %vm14, %v436
  %443 = vst.msk [vmem:[#allocation2 + $0x20] sm:$0xff] %vm14, %v437
  %444 = vst.msk [vmem:[#allocation2 + $0x28] sm:$0x3] %vm56, %v438
  %v445 = vld [vmem:[%s432] sm:$0xff]
  %v446 = vld [vmem:[%s432 + $0x8] sm:$0xff]
  %v447 = vld [vmem:[%s432 + $0x10] sm:$0xff]
  %v448 = vld [vmem:[%s432 + $0x18] sm:$0xff]
  %v449 = vld [vmem:[%s432 + $0x20] sm:$0xff]
  %v450 = vld [vmem:[%s432 + $0x28] sm:$0x3]
  %457 = vrot.lane.b32.xlu0 %v445, 127
  %v458 = vpop.permute.xlu0 %457
  %459 = vrot.lane.b32.xlu0 %v446, 127
  %v460 = vpop.permute.xlu0 %459
  %461 = vrot.lane.b32.xlu0 %v447, 127
  %v462 = vpop.permute.xlu0 %461
  %463 = vrot.lane.b32.xlu0 %v448, 127
  %v464 = vpop.permute.xlu0 %463
  %465 = vrot.lane.b32.xlu0 %v449, 127
  %v466 = vpop.permute.xlu0 %465
  %467 = vrot.lane.b32.xlu0 %v450, 127
  %v468 = vpop.permute.xlu0 %467
  %475 = vst.msk [vmem:[#allocation2 + $0x30] sm:$0xff] %vm14, %v458
  %476 = vst.msk [vmem:[#allocation2 + $0x38] sm:$0xff] %vm14, %v460
  %477 = vst.msk [vmem:[#allocation2 + $0x40] sm:$0xff] %vm14, %v462
  %478 = vst.msk [vmem:[#allocation2 + $0x48] sm:$0xff] %vm14, %v464
  %479 = vst.msk [vmem:[#allocation2 + $0x50] sm:$0xff] %vm14, %v466
  %480 = vst.msk [vmem:[#allocation2 + $0x58] sm:$0x3] %vm56, %v468
  %v481 = vld [vmem:[%s432] sm:$0xff]
  %v482 = vld [vmem:[%s432 + $0x8] sm:$0xff]
  %v483 = vld [vmem:[%s432 + $0x10] sm:$0xff]
  %v484 = vld [vmem:[%s432 + $0x18] sm:$0xff]
  %v485 = vld [vmem:[%s432 + $0x20] sm:$0xff]
  %v486 = vld [vmem:[%s432 + $0x28] sm:$0x3]
  %493 = vrot.lane.b32.xlu0 %v481, 126
  %v494 = vpop.permute.xlu0 %493
  %495 = vrot.lane.b32.xlu0 %v482, 126
  %v496 = vpop.permute.xlu0 %495
  %497 = vrot.lane.b32.xlu0 %v483, 126
  %v498 = vpop.permute.xlu0 %497
  %499 = vrot.lane.b32.xlu0 %v484, 126
  %v500 = vpop.permute.xlu0 %499
  %501 = vrot.lane.b32.xlu0 %v485, 126
  %v502 = vpop.permute.xlu0 %501
  %503 = vrot.lane.b32.xlu0 %v486, 126
  %v504 = vpop.permute.xlu0 %503
  %511 = vst.msk [vmem:[#allocation2 + $0x60] sm:$0xff] %vm14, %v494
  %512 = vst.msk [vmem:[#allocation2 + $0x68] sm:$0xff] %vm14, %v496
  %513 = vst.msk [vmem:[#allocation2 + $0x70] sm:$0xff] %vm14, %v498
  %514 = vst.msk [vmem:[#allocation2 + $0x78] sm:$0xff] %vm14, %v500
  %515 = vst.msk [vmem:[#allocation2 + $0x80] sm:$0xff] %vm14, %v502
  %516 = vst.msk [vmem:[#allocation2 + $0x88] sm:$0x3] %vm56, %v504
  %v517 = vld [vmem:[%s432] sm:$0xff]
  %v518 = vld [vmem:[%s432 + $0x8] sm:$0xff]
  %v519 = vld [vmem:[%s432 + $0x10] sm:$0xff]
  %v520 = vld [vmem:[%s432 + $0x18] sm:$0xff]
  %v521 = vld [vmem:[%s432 + $0x20] sm:$0xff]
  %v522 = vld [vmem:[%s432 + $0x28] sm:$0x3]
  %529 = vrot.lane.b32.xlu0 %v517, 125
  %v530 = vpop.permute.xlu0 %529
  %531 = vrot.lane.b32.xlu0 %v518, 125
  %v532 = vpop.permute.xlu0 %531
  %533 = vrot.lane.b32.xlu0 %v519, 125
  %v534 = vpop.permute.xlu0 %533
  %535 = vrot.lane.b32.xlu0 %v520, 125
  %v536 = vpop.permute.xlu0 %535
  %537 = vrot.lane.b32.xlu0 %v521, 125
  %v538 = vpop.permute.xlu0 %537
  %539 = vrot.lane.b32.xlu0 %v522, 125
  %v540 = vpop.permute.xlu0 %539
  %547 = vst.msk [vmem:[#allocation2 + $0x90] sm:$0xff] %vm14, %v530
  %548 = vst.msk [vmem:[#allocation2 + $0x98] sm:$0xff] %vm14, %v532
  %549 = vst.msk [vmem:[#allocation2 + $0xa0] sm:$0xff] %vm14, %v534
  %550 = vst.msk [vmem:[#allocation2 + $0xa8] sm:$0xff] %vm14, %v536
  %551 = vst.msk [vmem:[#allocation2 + $0xb0] sm:$0xff] %vm14, %v538
  %552 = vst.msk [vmem:[#allocation2 + $0xb8] sm:$0x3] %vm56, %v540
  %v553 = vld [vmem:[%s432] sm:$0xff]
  %v554 = vld [vmem:[%s432 + $0x8] sm:$0xff]
  %v555 = vld [vmem:[%s432 + $0x10] sm:$0xff]
  %v556 = vld [vmem:[%s432 + $0x18] sm:$0xff]
  %v557 = vld [vmem:[%s432 + $0x20] sm:$0xff]
  %v558 = vld [vmem:[%s432 + $0x28] sm:$0x3]
  %565 = vrot.lane.b32.xlu0 %v553, 124
  %v566 = vpop.permute.xlu0 %565
  %567 = vrot.lane.b32.xlu0 %v554, 124
  %v568 = vpop.permute.xlu0 %567
  %569 = vrot.lane.b32.xlu0 %v555, 124
  %v570 = vpop.permute.xlu0 %569
  %571 = vrot.lane.b32.xlu0 %v556, 124
  %v572 = vpop.permute.xlu0 %571
  %573 = vrot.lane.b32.xlu0 %v557, 124
  %v574 = vpop.permute.xlu0 %573
  %575 = vrot.lane.b32.xlu0 %v558, 124
  %v576 = vpop.permute.xlu0 %575
  %583 = vst.msk [vmem:[#allocation2 + $0xc0] sm:$0xff] %vm14, %v566
  %584 = vst.msk [vmem:[#allocation2 + $0xc8] sm:$0xff] %vm14, %v568
  %585 = vst.msk [vmem:[#allocation2 + $0xd0] sm:$0xff] %vm14, %v570
  %586 = vst.msk [vmem:[#allocation2 + $0xd8] sm:$0xff] %vm14, %v572
  %587 = vst.msk [vmem:[#allocation2 + $0xe0] sm:$0xff] %vm14, %v574
  %588 = vst.msk [vmem:[#allocation2 + $0xe8] sm:$0x3] %vm56, %v576
  %v589 = vld [vmem:[%s1] sm:$0xff]
  %v590 = vld [vmem:[%s1 + $0x8] sm:$0xff]
  %v591 = vld [vmem:[%s1 + $0x10] sm:$0xff]
  %v592 = vld [vmem:[%s1 + $0x18] sm:$0xff]
  %v593 = vld [vmem:[%s1 + $0x20] sm:$0xff]
  %v594 = vld [vmem:[%s1 + $0x28] sm:$0xff]
  %v595 = vld [vmem:[%s1 + $0x30] sm:$0xff]
  %v596 = vld [vmem:[%s1 + $0x38] sm:$0xff]
  %v597 = vld [vmem:[%s1 + $0x40] sm:$0xff]
  %v598 = vld [vmem:[%s1 + $0x48] sm:$0xff]
  %v599 = vld [vmem:[%s1 + $0x50] sm:$0xff]
  %v600 = vld [vmem:[%s1 + $0x58] sm:$0xff]
  %v601 = vld [vmem:[%s1 + $0x60] sm:$0xff]
  %v602 = vld [vmem:[%s1 + $0x68] sm:$0xff]
  %v603 = vld [vmem:[#allocation2] sm:$0xff]
  %v604 = vld [vmem:[#allocation2 + $0x8] sm:$0xff]
  %v605 = vld [vmem:[#allocation2 + $0x10] sm:$0xff]
  %v606 = vld [vmem:[#allocation2 + $0x18] sm:$0xff]
  %v607 = vld [vmem:[#allocation2 + $0x20] sm:$0xff]
  %v608 = vld [vmem:[#allocation2 + $0x28] sm:$0xff]
  %v609 = vld [vmem:[#allocation2 + $0x30] sm:$0xff]
  %v610 = vld [vmem:[#allocation2 + $0x38] sm:$0xff]
  %v611 = vld [vmem:[#allocation2 + $0x40] sm:$0xff]
  %v612 = vld [vmem:[#allocation2 + $0x48] sm:$0xff]
  %v613 = vld [vmem:[#allocation2 + $0x50] sm:$0xff]
  %v614 = vld [vmem:[#allocation2 + $0x58] sm:$0xff]
  %v615 = vld [vmem:[#allocation2 + $0x60] sm:$0xff]
  %v616 = vld [vmem:[#allocation2 + $0x68] sm:$0xff]
  %v617 = vld [vmem:[#allocation2 + $0x70] sm:$0xff]
  %v618 = vld [vmem:[#allocation2 + $0x78] sm:$0xff]
  %v619 = vld [vmem:[#allocation2 + $0x80] sm:$0xff]
  %v620 = vld [vmem:[#allocation2 + $0x88] sm:$0xff]
  %v621 = vld [vmem:[#allocation2 + $0x90] sm:$0xff]
  %v622 = vld [vmem:[#allocation2 + $0x98] sm:$0xff]
  %v623 = vld [vmem:[#allocation2 + $0xa0] sm:$0xff]
  %v624 = vld [vmem:[#allocation2 + $0xa8] sm:$0xff]
  %v625 = vld [vmem:[#allocation2 + $0xb0] sm:$0xff]
  %v626 = vld [vmem:[#allocation2 + $0xb8] sm:$0xff]
  %v627 = vld [vmem:[#allocation2 + $0xc0] sm:$0xff]
  %v628 = vld [vmem:[#allocation2 + $0xc8] sm:$0xff]
  %v629 = vld [vmem:[#allocation2 + $0xd0] sm:$0xff]
  %v630 = vld [vmem:[#allocation2 + $0xd8] sm:$0xff]
  %v631 = vld [vmem:[#allocation2 + $0xe0] sm:$0xff]
  %v632 = vld [vmem:[#allocation2 + $0xe8] sm:$0xff]
  %v633 = vld [vmem:[%s2] sm:$0xff]
  %v634 = vld [vmem:[%s2 + $0x8] sm:$0xff]
  %v635 = vld [vmem:[%s2 + $0x10] sm:$0xff]
  %v636 = vld [vmem:[%s2 + $0x18] sm:$0xff]
  %v637 = vld [vmem:[%s2 + $0x20] sm:$0xff]
  %v638 = vld [vmem:[%s2 + $0x28] sm:$0xff]
  %v639 = vld [vmem:[%s2 + $0x30] sm:$0xff]
  %641 = vset.pattern.permute.xlu0 0
  %642 = vperm.xlu0 %641, %v633
  %v643 = vpop.permute.xlu0 %642
  %646 = vset.pattern.permute.xlu0 0
  %647 = vperm.xlu0 %646, %v634
  %v648 = vpop.permute.xlu0 %647
  %651 = vset.pattern.permute.xlu0 0
  %652 = vperm.xlu0 %651, %v635
  %v653 = vpop.permute.xlu0 %652
  %656 = vset.pattern.permute.xlu0 0
  %657 = vperm.xlu0 %656, %v636
  %v658 = vpop.permute.xlu0 %657
  %661 = vset.pattern.permute.xlu0 0
  %662 = vperm.xlu0 %661, %v637
  %v663 = vpop.permute.xlu0 %662
  %666 = vset.pattern.permute.xlu0 0
  %667 = vperm.xlu0 %666, %v638
  %v668 = vpop.permute.xlu0 %667
  %671 = vset.pattern.permute.xlu0 0
  %672 = vperm.xlu0 %671, %v639
  %v673 = vpop.permute.xlu0 %672
  %v676 = vsel %vm288, %v590, 0
  %v679 = vsel %vm288, %v592, 0
  %v682 = vsel %vm288, %v594, 0
  %v685 = vsel %vm288, %v596, 0
  %v688 = vsel %vm288, %v598, 0
  %v691 = vsel %vm288, %v600, 0
  %v694 = vsel %vm288, %v602, 0
  %696 = vmatprep.subr.mxu0 0.0
  %697 = vmatpush1.msra.mxu0 %v618
  %698 = vmatprep.subr.mxu0 0.0
  %699 = vmatpush1.msra.mxu0 %v617
  %700 = vmatprep.subr.mxu0 0.0
  %701 = vmatpush1.msra.mxu0 %v616
  %702 = vmatprep.subr.mxu0 0.0
  %703 = vmatpush1.msra.mxu0 %v615
  %704 = vmatprep.subr.mxu0 0.0
  %705 = vmatpush1.msra.mxu0 %v614
  %706 = vmatprep.subr.mxu0 0.0
  %707 = vmatpush1.msra.mxu0 %v613
  %708 = vmatprep.subr.mxu0 0.0
  %709 = vmatpush1.msra.mxu0 %v612
  %710 = vmatprep.subr.mxu0 0.0
  %711 = vmatpush1.msra.mxu0 %v611
  %712 = vmatprep.subr.mxu0 0.0
  %713 = vmatpush1.msra.mxu0 %v610
  %714 = vmatprep.subr.mxu0 0.0
  %715 = vmatpush1.msra.mxu0 %v609
  %716 = vmatprep.subr.mxu0 0.0
  %717 = vmatpush1.msra.mxu0 %v608
  %718 = vmatprep.subr.mxu0 0.0
  %719 = vmatpush1.msra.mxu0 %v607
  %720 = vmatprep.subr.mxu0 0.0
  %721 = vmatpush1.msra.mxu0 %v606
  %722 = vmatprep.subr.mxu0 0.0
  %723 = vmatpush1.msra.mxu0 %v605
  %724 = vmatprep.subr.mxu0 0.0
  %725 = vmatpush1.msra.mxu0 %v604
  %726 = vmatprep.subr.mxu0 0.0
  %727 = vmatpush1.msra.mxu0 %v603
  %728 = vmatprep.subr.mxu0 0.0
  %729 = vmatpush2.msra.mxu0 0.0
  %730 = vmatprep.subr.mxu0 0.0
  %731 = vmatpush2.msra.mxu0 0.0
  %732 = vmatprep.subr.mxu0 0.0
  %733 = vmatpush2.msra.mxu0 %v632
  %734 = vmatprep.subr.mxu0 0.0
  %735 = vmatpush2.msra.mxu0 %v631
  %736 = vmatprep.subr.mxu0 0.0
  %737 = vmatpush2.msra.mxu0 %v630
  %738 = vmatprep.subr.mxu0 0.0
  %739 = vmatpush2.msra.mxu0 %v629
  %740 = vmatprep.subr.mxu0 0.0
  %741 = vmatpush2.msra.mxu0 %v628
  %742 = vmatprep.subr.mxu0 0.0
  %743 = vmatpush2.msra.mxu0 %v627
  %744 = vmatprep.subr.mxu0 0.0
  %745 = vmatpush2.msra.mxu0 %v626
  %746 = vmatprep.subr.mxu0 0.0
  %747 = vmatpush2.msra.mxu0 %v625
  %748 = vmatprep.subr.mxu0 0.0
  %749 = vmatpush2.msra.mxu0 %v624
  %750 = vmatprep.subr.mxu0 0.0
  %751 = vmatpush2.msra.mxu0 %v623
  %752 = vmatprep.subr.mxu0 0.0
  %753 = vmatpush2.msra.mxu0 %v622
  %754 = vmatprep.subr.mxu0 0.0
  %755 = vmatpush2.msra.mxu0 %v621
  %756 = vmatprep.subr.mxu0 0.0
  %757 = vmatpush2.msra.mxu0 %v620
  %758 = vmatprep.subr.mxu0 0.0
  %759 = vmatpush2.msra.mxu0 %v619
  %760 = vmatprep.mubr.f32.mxu0 %v676
  %761 = vmatmul.mubr.f32.gmra.mxu0 %v589
  %v762 = vpop.f32.mrf.mxu0
  %v763 = vadd.f32 %v643, %v762
  %v764 = vpop.f32.mrf.mxu0
  %765 = vmatprep.mubr.f32.mxu0 %v679
  %766 = vmatmul.mubr.f32.gmra.mxu0 %v591
  %v767 = vpop.f32.mrf.mxu0
  %v768 = vadd.f32 %v648, %v767
  %v769 = vpop.f32.mrf.mxu0
  %770 = vmatprep.mubr.f32.mxu0 %v682
  %771 = vmatmul.mubr.f32.gmra.mxu0 %v593
  %v772 = vpop.f32.mrf.mxu0
  %v773 = vadd.f32 %v653, %v772
  %v774 = vpop.f32.mrf.mxu0
  %775 = vmatprep.mubr.f32.mxu0 %v685
  %776 = vmatmul.mubr.f32.gmra.mxu0 %v595
  %v777 = vpop.f32.mrf.mxu0
  %v778 = vadd.f32 %v658, %v777
  %v779 = vpop.f32.mrf.mxu0
  %780 = vmatprep.mubr.f32.mxu0 %v688
  %781 = vmatmul.mubr.f32.gmra.mxu0 %v597
  %v782 = vpop.f32.mrf.mxu0
  %v783 = vadd.f32 %v663, %v782
  %v784 = vpop.f32.mrf.mxu0
  %785 = vmatprep.mubr.f32.mxu0 %v691
  %786 = vmatmul.mubr.f32.gmra.mxu0 %v599
  %v787 = vpop.f32.mrf.mxu0
  %v788 = vadd.f32 %v668, %v787
  %v789 = vpop.f32.mrf.mxu0
  %790 = vmatprep.mubr.f32.mxu0 %v694
  %791 = vmatmul.mubr.f32.gmra.mxu0 %v601
  %v792 = vpop.f32.mrf.mxu0
  %v793 = vadd.f32 %v673, %v792
  %v794 = vpop.f32.mrf.mxu0
  %795 = vdwg.mxu0
  %v796 = vmax.f32 %v763, 0.0
  %v797 = vmax.f32 %v768, 0.0
  %v798 = vmax.f32 %v773, 0.0
  %v799 = vmax.f32 %v778, 0.0
  %v800 = vmax.f32 %v783, 0.0
  %v801 = vmax.f32 %v788, 0.0
  %v802 = vmax.f32 %v793, 0.0
  %s803 = scalar_lea.vmem %s3, 112
  %804 = vst.msk [vmem:[%s803] sm:$0xff] %vm14, %v796
  %805 = vst.msk [vmem:[%s803 + $0x8] sm:$0xff] %vm14, %v797
  %806 = vst.msk [vmem:[%s803 + $0x10] sm:$0xff] %vm14, %v798
  %807 = vst.msk [vmem:[%s803 + $0x18] sm:$0xff] %vm14, %v799
  %808 = vst.msk [vmem:[%s803 + $0x20] sm:$0xff] %vm14, %v800
  %809 = vst.msk [vmem:[%s803 + $0x28] sm:$0xff] %vm14, %v801
  %810 = vst.msk [vmem:[%s803 + $0x30] sm:$0xff] %vm14, %v802
  %s811 = scalar_lea.vmem %s3, 168
  %812 = vst.msk [vmem:[%s811] sm:$0xff] %vm14, %v796
  %813 = vst.msk [vmem:[%s811 + $0x8] sm:$0xff] %vm14, %v797
  %814 = vst.msk [vmem:[%s811 + $0x10] sm:$0xff] %vm14, %v798
  %815 = vst.msk [vmem:[%s811 + $0x18] sm:$0xff] %vm14, %v799
  %816 = vst.msk [vmem:[%s811 + $0x20] sm:$0xff] %vm14, %v800
  %817 = vst.msk [vmem:[%s811 + $0x28] sm:$0xff] %vm14, %v801
  %818 = vst.msk [vmem:[%s811 + $0x30] sm:$0xff] %vm14, %v802
  // Predicated region
  $region14: #{model_forward.1} parent=0 // pred_check
    _
  $region15: #{model_forward.1} parent=0 // pred_check_branch
    %820 = sbr.rel (0) target = $region17
  $region16: #{model_forward.1} parent=0 // pred_region
    _
  $region17: #{model_forward.1} parent=0 // pred_fallthru
    _
  // Predicated region
  $region18: #{model_forward.1} parent=0 // pred_check
    _
  $region19: #{model_forward.1} parent=0 // pred_check_branch
    %822 = sbr.rel (0) target = $region21
  $region20: #{model_forward.1} parent=0 // pred_region
    _
  $region21: #{model_forward.1} parent=0 // pred_fallthru
    _

</llo_original>
